<compile_context>
chip_gen: v5e
topology: v5e:2x2
jax: 0.10.0
libtpu: 0.0.40
codegen_flags: <defaults>
</compile_context>

<pallas_src>
import jax
import jax.numpy as jnp
from jax.experimental import pallas as pl
from jax.experimental.pallas import tpu as pltpu

LANES = 128
SUBLANES = 8
MAX_BLOCK_ROWS = 2048  # (2048, 128) f32 = 1 MiB per input per pipeline buffer


def _bce_partial_kernel(y_ref, p_ref, out_ref, *, eps, n, block_rows, need_mask):
    # Cast in-kernel (keeps HBM traffic at the inputs' native width).
    y = y_ref[...].astype(jnp.float32)
    p = p_ref[...].astype(jnp.float32)

    c_ent = -y * jnp.log(p + eps) - (1.0 - y) * jnp.log(1.0 - p + eps)

    if need_mask:
        # Only needed when n does not tile exactly; zero out padded elements.
        i = pl.program_id(0)
        row_ids = jax.lax.broadcasted_iota(jnp.int32, (block_rows, LANES), 0)
        col_ids = jax.lax.broadcasted_iota(jnp.int32, (block_rows, LANES), 1)
        flat_idx = (i * block_rows + row_ids) * LANES + col_ids
        c_ent = jnp.where(flat_idx < n, c_ent, 0.0)

    # Fold sublane-tiles on the VPU: (block_rows, 128) -> (block_rows/8, 8, 128)
    # is layout-preserving, and summing axis 0 is plain vreg adds. One (8, 128)
    # partial per block goes to this block's output slot.
    partial = jnp.sum(c_ent.reshape(block_rows // SUBLANES, SUBLANES, LANES), axis=0)
    out_ref[0] = partial


def cross_entropy_loss_custom(y, y_hat, eps=1e-5):
    """Pallas implementation of CrossEntropyLossCustom.forward."""
    assert y.shape == y_hat.shape
    out_dtype = jnp.result_type(y.dtype, y_hat.dtype)
    n = int(y.size)

    # Flatten without copying (reshape of a contiguous array is free).
    y_flat = jnp.reshape(y, (-1,))
    p_flat = jnp.reshape(y_hat, (-1,))

    rows_needed = max(pl.cdiv(n, LANES), 1)
    block_rows = min(MAX_BLOCK_ROWS, pl.cdiv(rows_needed, SUBLANES) * SUBLANES)
    padded_rows = pl.cdiv(rows_needed, block_rows) * block_rows
    padded = padded_rows * LANES
    pad = padded - n

    if pad > 0:
        # Pad y_hat with 0.5 so both logs stay finite; padded elements are
        # zeroed in-kernel via the iota mask.
        y_flat = jnp.pad(y_flat, (0, pad))
        p_flat = jnp.pad(p_flat, (0, pad), constant_values=0.5)

    y2 = y_flat.reshape(padded_rows, LANES)
    p2 = p_flat.reshape(padded_rows, LANES)

    grid = (padded_rows // block_rows,)
    num_blocks = grid[0]

    in_spec = pl.BlockSpec((block_rows, LANES), lambda i: (i, 0))

    kernel = lambda yr, pr, outr: _bce_partial_kernel(
        yr, pr, outr, eps=eps, n=n, block_rows=block_rows, need_mask=pad > 0
    )

    partials = pl.pallas_call(
        kernel,
        out_shape=jax.ShapeDtypeStruct((num_blocks, SUBLANES, LANES), jnp.float32),
        grid_spec=pltpu.PrefetchScalarGridSpec(
            num_scalar_prefetch=0,
            grid=grid,
            in_specs=[in_spec, in_spec],
            out_specs=pl.BlockSpec((1, SUBLANES, LANES), lambda i: (i, 0, 0)),
        ),
        compiler_params=pltpu.CompilerParams(
            dimension_semantics=("parallel",),
        ),
    )(y2, p2)

    # Tiny final reduction + mean outside the kernel.
    mean = jnp.sum(partials) / jnp.float32(n)
    return mean.astype(out_dtype)


def _reference(y, y_hat, eps=1e-5):
    c_ent = -y * jnp.log(y_hat + eps) - (1 - y) * jnp.log(1 - y_hat + eps)
    return jnp.mean(c_ent.reshape(-1))


if __name__ == "__main__":
    key = jax.random.PRNGKey(0)
    k1, k2 = jax.random.split(key)
    # Small NCHW-like shape consistent with a segmentation-style loss.
    shape = (2, 4, 16, 16)
    y = (jax.random.uniform(k1, shape, jnp.float32) > 0.5).astype(jnp.float32)
    y_hat = jax.random.uniform(k2, shape, jnp.float32, minval=0.01, maxval=0.99)

    out = cross_entropy_loss_custom(y, y_hat)
    out = jax.block_until_ready(out)

    ref = _reference(y, y_hat)
    assert jnp.allclose(out, ref, rtol=1e-5, atol=1e-6), (out, ref)

    # Also exercise a non-tile-aligned size (ragged tail path).
    k3, k4 = jax.random.split(k2)
    y_r = (jax.random.uniform(k3, (3, 5, 7), jnp.float32) > 0.5).astype(jnp.float32)
    p_r = jax.random.uniform(k4, (3, 5, 7), jnp.float32, minval=0.01, maxval=0.99)
    out_r = jax.block_until_ready(cross_entropy_loss_custom(y_r, p_r))
    assert jnp.allclose(out_r, _reference(y_r, p_r), rtol=1e-5, atol=1e-6), (
        out_r,
        _reference(y_r, p_r),
    )

    print("KERNEL_OK")
</pallas_src>

<mosaic_0001>
module attributes {stable_mosaic.version = 11 : i64} {
  func.func @_lambda_(%arg0: i32, %arg1: memref<16x128xf32, #tpu.memory_space<vmem>>, %arg2: memref<16x128xf32, #tpu.memory_space<vmem>>, %arg3: memref<1x8x128xf32, #tpu.memory_space<vmem>>) attributes {dimension_semantics = [#tpu.dimension_semantics<parallel>], iteration_bounds = array<i64: 1>, scalar_prefetch = 0 : i64, scratch_operands = 0 : i64, tpu.core_type = #tpu.core_type<tc>, window_params = [{transform_indices = @transform_0, window_bounds = array<i64: 16, 128>}, {transform_indices = @transform_1, window_bounds = array<i64: 16, 128>}, {transform_indices = @transform_2, window_bounds = array<i64: 1, 8, 128>}]} {
    %c0 = arith.constant 0 : index
    %c0_0 = arith.constant 0 : index
    %0 = vector.load %arg1[%c0, %c0_0] : memref<16x128xf32, #tpu.memory_space<vmem>>, vector<16x128xf32>
    %c0_1 = arith.constant 0 : index
    %c0_2 = arith.constant 0 : index
    %1 = vector.load %arg2[%c0_1, %c0_2] : memref<16x128xf32, #tpu.memory_space<vmem>>, vector<16x128xf32>
    %cst = arith.constant 0.000000e+00 : f32
    %2 = vector.broadcast %cst : f32 to vector<16x128xf32>
    %3 = arith.subf %2, %0 : vector<16x128xf32>
    %cst_3 = arith.constant 9.99999974E-6 : f32
    %4 = vector.broadcast %cst_3 : f32 to vector<16x128xf32>
    %5 = arith.addf %1, %4 : vector<16x128xf32>
    %6 = math.log %5 : vector<16x128xf32>
    %7 = arith.mulf %3, %6 : vector<16x128xf32>
    %cst_4 = arith.constant 1.000000e+00 : f32
    %8 = vector.broadcast %cst_4 : f32 to vector<16x128xf32>
    %9 = arith.subf %8, %0 : vector<16x128xf32>
    %cst_5 = arith.constant 1.000000e+00 : f32
    %10 = vector.broadcast %cst_5 : f32 to vector<16x128xf32>
    %11 = arith.subf %10, %1 : vector<16x128xf32>
    %cst_6 = arith.constant 9.99999974E-6 : f32
    %12 = vector.broadcast %cst_6 : f32 to vector<16x128xf32>
    %13 = arith.addf %11, %12 : vector<16x128xf32>
    %14 = math.log %13 : vector<16x128xf32>
    %15 = arith.mulf %9, %14 : vector<16x128xf32>
    %16 = arith.subf %7, %15 : vector<16x128xf32>
    %17 = vector.shape_cast %16 : vector<16x128xf32> to vector<2x8x128xf32>
    %cst_7 = arith.constant dense<0.000000e+00> : vector<8x128xf32>
    %18 = vector.multi_reduction <add>, %17, %cst_7 [0] : vector<2x8x128xf32> to vector<8x128xf32>
    %c0_8 = arith.constant 0 : index
    %c0_9 = arith.constant 0 : index
    %c0_10 = arith.constant 0 : index
    %19 = vector.load %arg3[%c0_8, %c0_9, %c0_10] : memref<1x8x128xf32, #tpu.memory_space<vmem>>, vector<1x8x128xf32>
    %20 = vector.shape_cast %19 : vector<1x8x128xf32> to vector<8x128xf32>
    %21 = vector.shape_cast %18 : vector<8x128xf32> to vector<1x8x128xf32>
    tpu.vector_store %arg3[%c0_8, %c0_9, %c0_10], %21 {strides = array<i32>} : memref<1x8x128xf32, #tpu.memory_space<vmem>>, vector<1x8x128xf32>,
    return
  }
  func.func @transform_0(%arg0: i32) -> (i32, i32) {
    %c0_i32 = arith.constant 0 : i32
    %c0_i32_0 = arith.constant 0 : i32
    return %arg0, %c0_i32 : i32, i32
  }
  func.func @transform_1(%arg0: i32) -> (i32, i32) {
    %c0_i32 = arith.constant 0 : i32
    %c0_i32_0 = arith.constant 0 : i32
    return %arg0, %c0_i32 : i32, i32
  }
  func.func @transform_2(%arg0: i32) -> (i32, i32, i32) {
    %c0_i32 = arith.constant 0 : i32
    %c0_i32_0 = arith.constant 0 : i32
    %c0_i32_1 = arith.constant 0 : i32
    return %arg0, %c0_i32, %c0_i32_0 : i32, i32, i32
  }
}

</mosaic_0001>

<llo_original>
// kernel: tpu_custom_call.1
$region0: #{tpu_custom_call.1}
  #allocation0 [shape = 'u32[]', space=smem, size = 0x4, offset = 0x4, fixed_abs, tag = 'smem constant byte address 0x4 - core index']
  #allocation1 [shape = 'u32[72,128]{1,0:T(1,128)}', space=vmem, size = 0x9000, scoped, tag = 'internal scratch']
  %s0 = inlined_call_operand.hbm [shape: f32[16,128], index: 0, kind: input, shape index: {}]
  %s1 = inlined_call_operand.hbm [shape: f32[16,128], index: 1, kind: input, shape index: {}]
  %s2 = inlined_call_operand.hbm [shape: f32[1,8,128], index: 2, kind: output, shape index: {}]
  %s3 = sld [smem:[#allocation0]]
  $region26: #{tpu_custom_call.1} parent=0
    _
  %s5 = ssub.s32 1, %s3
  %s6 = scalar_select 0, %s5, %s3
  $region1: #{tpu_custom_call.1} parent=0
    #allocation2 [shape = 'u8[8192]{0}', space=vmem, size = 0x2000, scoped, tag = 'input window, operand 0, single buffered']
    #allocation3 [shape = 's32[1]{0}', space=sflag, size = 0x4, scoped, tag = 'scoped memory for tpu_custom_call.1']
    #allocation4 [shape = 's32[1]{0}', space=sflag, size = 0x4, scoped, tag = 'scoped memory for tpu_custom_call.1']
    #allocation5 [shape = 'u8[8192]{0}', space=vmem, size = 0x2000, scoped, tag = 'input window, operand 1, single buffered']
    #allocation6 [shape = 's32[1]{0}', space=sflag, size = 0x4, scoped, tag = 'scoped memory for tpu_custom_call.1']
    #allocation7 [shape = 'u8[4096]{0}', space=vmem, size = 0x1000, scoped, tag = 'output window, operand 0, single buffered']
    %7 = vsyncpa [#allocation3], 0
    %8 = vsyncpa [#allocation6], 0
    %9 = vsyncpa [#allocation4], 0
    // Predicated region
    $region2: #{tpu_custom_call.1} parent=1 // pred_check
      _
    $region3: #{tpu_custom_call.1} parent=1 // pred_check_branch
      %11 = sbr.rel (0) target = $region5
    $region4: #{tpu_custom_call.1} parent=1 // pred_region
      %13 = vsyncadd [#allocation3], 0
      %s14 = sshll.u32 %s0, 4
      %s15 = int_to_ptr.hbm [resolvable:$true] %s14
      %s16 = sshll.u32 [#allocation2], 4
      %s17 = int_to_ptr.vmem [resolvable:$true] %s16
      %22 = dma.hbm_to_vmem [thread:$0]  %s15, 256, %s17, [#allocation3], 128, 128, 8
    $region5: #{tpu_custom_call.1} parent=1 // pred_fallthru
      _
    // Predicated region
    $region6: #{tpu_custom_call.1} parent=1 // pred_check
      _
    $region7: #{tpu_custom_call.1} parent=1 // pred_check_branch
      %24 = sbr.rel (0) target = $region9
    $region8: #{tpu_custom_call.1} parent=1 // pred_region
      %26 = vsyncadd [#allocation6], 0
      %s27 = sshll.u32 %s1, 4
      %s28 = int_to_ptr.hbm [resolvable:$true] %s27
      %s29 = sshll.u32 [#allocation5], 4
      %s30 = int_to_ptr.vmem [resolvable:$true] %s29
      %35 = dma.hbm_to_vmem [thread:$0]  %s28, 256, %s30, [#allocation6], 128, 128, 8
    $region9: #{tpu_custom_call.1} parent=1 // pred_fallthru
      _
    // Predicated region
    $region10: #{tpu_custom_call.1} parent=1 // pred_check
      _
    $region11: #{tpu_custom_call.1} parent=1 // pred_check_branch
      %37 = sbr.rel (0) target = $region13
    $region12: #{tpu_custom_call.1} parent=1 // pred_region
      %39 = dma.done [#allocation3], 256
    $region13: #{tpu_custom_call.1} parent=1 // pred_fallthru
      _
    // Predicated region
    $region14: #{tpu_custom_call.1} parent=1 // pred_check
      _
    $region15: #{tpu_custom_call.1} parent=1 // pred_check_branch
      %41 = sbr.rel (0) target = $region17
    $region16: #{tpu_custom_call.1} parent=1 // pred_region
      %43 = dma.done [#allocation6], 256
    $region17: #{tpu_custom_call.1} parent=1 // pred_fallthru
      _
    %v44 = vld [vmem:[#allocation2] sm:$0xff]
    %v45 = vld [vmem:[#allocation2 + $0x8] sm:$0xff]
    %v46 = vld [vmem:[#allocation5] sm:$0xff]
    %v47 = vld [vmem:[#allocation5 + $0x8] sm:$0xff]
    %v48 = vsub.f32 0.0, %v44
    %v49 = vsub.f32 0.0, %v45
    %v50 = vadd.f32 %v46, 1e-05
    %v51 = vadd.f32 %v47, 1e-05
    %v52 = vlog2.pop %v50
    %v53 = vmul.f32 %v52, 0.6931472
    %v54 = vlog2.pop %v51
    %v55 = vmul.f32 %v54, 0.6931472
    %v56 = vmul.f32 %v48, %v53
    %v57 = vmul.f32 %v49, %v55
    %v58 = vsub.f32 1.0, %v44
    %v59 = vsub.f32 1.0, %v45
    %v60 = vsub.f32 1.0, %v46
    %v61 = vsub.f32 1.0, %v47
    %v62 = vadd.f32 %v60, 1e-05
    %v63 = vadd.f32 %v61, 1e-05
    %v64 = vlog2.pop %v62
    %v65 = vmul.f32 %v64, 0.6931472
    %v66 = vlog2.pop %v63
    %v67 = vmul.f32 %v66, 0.6931472
    %v68 = vmul.f32 %v58, %v65
    %v69 = vmul.f32 %v59, %v67
    %v70 = vsub.f32 %v56, %v68
    %v71 = vsub.f32 %v57, %v69
    %v72 = vadd.f32 %v70, %v71
    %73 = vst [vmem:[#allocation7] sm:$0xff] %v72
    // Predicated region
    $region18: #{tpu_custom_call.1} parent=1 // pred_check
      _
    $region19: #{tpu_custom_call.1} parent=1 // pred_check_branch
      %75 = sbr.rel (0) target = $region21
    $region20: #{tpu_custom_call.1} parent=1 // pred_region
      %77 = vsyncadd [#allocation4], 0
      %s79 = sshll.u32 [#allocation7], 4
      %s80 = int_to_ptr.vmem [resolvable:$true] %s79
      %s81 = sshll.u32 %s2, 4
      %s82 = int_to_ptr.hbm [resolvable:$true] %s81
      %84 = dma.vmem_to_hbm [thread:$0]  %s80, 128, %s82, [#allocation4]
    $region21: #{tpu_custom_call.1} parent=1 // pred_fallthru
      _
    // Predicated region
    $region22: #{tpu_custom_call.1} parent=1 // pred_check
      _
    $region23: #{tpu_custom_call.1} parent=1 // pred_check_branch
      %86 = sbr.rel (0) target = $region25
    $region24: #{tpu_custom_call.1} parent=1 // pred_region
      %88 = dma.done [#allocation4], 128
    $region25: #{tpu_custom_call.1} parent=1 // pred_fallthru
      _
    %89 = vsyncpa [#allocation3], 1
    %90 = vsyncpa [#allocation6], 1
    %91 = vsyncpa [#allocation4], 1

</llo_original>
